<compile_context>
chip_gen: v7x
topology: tpu7x:2x2x1
jax: 0.10.0
libtpu: 0.0.40
codegen_flags: <defaults>
</compile_context>

<pallas_src>
import jax
import jax.numpy as jnp
from jax.experimental import pallas as pl
from jax.experimental.pallas import tpu as pltpu


def _round_up(n, m):
    return ((n + m - 1) // m) * m


def _bpmll_kernel(x_ref, t_ref, o_ref):
    """Per-sample BPMLL loss for one (tn, L) batch tile (factorized, O(L)/row)."""
    x = x_ref[...].astype(jnp.float32)          # (tn, L) — labels on the lane axis
    t = t_ref[...].astype(jnp.float32)          # (tn, L) — upcast from int8/bool here
    n_labels = jnp.float32(x_ref.shape[1])

    # Per-sample normalization: dim * (L - dim).
    dim = jnp.sum(t, axis=1, keepdims=True)     # (tn, 1)
    norm = dim * (n_labels - dim)               # (tn, 1)

    # Stabilized rank-1 factorization of the pairwise sum.
    m = jnp.max(x, axis=1, keepdims=True)                               # (tn, 1)
    pos = jnp.sum(jnp.exp(m - x) * t, axis=1, keepdims=True)            # (tn, 1)
    neg = jnp.sum(jnp.exp(x - m) * (1.0 - t), axis=1, keepdims=True)    # (tn, 1)

    # Rows with norm == 0 give inf/nan exactly like the PyTorch reference.
    # Rows past the batch end in a ragged last tile compute garbage here but are
    # never written back (Pallas masks the out-of-bounds part of the output block).
    o_ref[...] = (pos * neg) / norm


def _choose_block_rows(n, l, x_itemsize, t_itemsize):
    """Tile rows: ~2 MiB x-tiles, multiple of 32 rows (int8 sublane tile), and
    double-buffered inputs capped at ~24 MiB of scoped VMEM (v7x/v5e safe)."""
    target_rows = (2 << 20) // max(l * x_itemsize, 1)
    tn = _round_up(min(max(target_rows, 256), 2048), 32)
    per_row_bytes = l * (x_itemsize + t_itemsize)
    budget = 24 << 20
    while tn > 32 and 2 * tn * per_row_bytes > budget:
        tn -= 32
    if n > 64:
        # Prefer >= 2 tiles so the "parallel" batch axis can shard across v7x's 2 TCs.
        tn = min(tn, _round_up(pl.cdiv(n, 2), 32))
    if n <= tn:
        # Single tile spanning the whole batch (block == full array dim: always legal).
        tn = n
    return tn


def bpmll_loss(x, t):
    x = jnp.asarray(x)
    if not jnp.issubdtype(x.dtype, jnp.floating):
        x = x.astype(jnp.float32)
    # Do NOT promote t: pass it through in its native (narrow) dtype; the kernel
    # upcasts in-register, so int8/bool targets save input HBM traffic.
    t = jnp.asarray(t)

    n, l = x.shape
    assert t.shape == (n, l), (t.shape, (n, l))

    x_item = jnp.dtype(x.dtype).itemsize
    t_item = jnp.dtype(t.dtype).itemsize
    tn = _choose_block_rows(n, l, x_item, t_item)
    num_tiles = pl.cdiv(n, tn)

    # Double-buffered input tiles + tiny per-row output tiles, with headroom.
    vmem_bytes = 2 * tn * l * (x_item + t_item) + 2 * tn * 4 + (2 << 20)
    vmem_bytes = int(min(max(vmem_bytes, 8 << 20), 100 << 20))

    cost = pl.CostEstimate(
        flops=8 * n * l,
        transcendentals=2 * n * l,
        bytes_accessed=n * l * (x_item + t_item) + n * 4,
    )

    per_row = pl.pallas_call(
        _bpmll_kernel,
        out_shape=jax.ShapeDtypeStruct((n, 1), jnp.float32),
        grid=(num_tiles,),
        in_specs=[
            pl.BlockSpec((tn, l), lambda i: (i, 0)),
            pl.BlockSpec((tn, l), lambda i: (i, 0)),
        ],
        out_specs=pl.BlockSpec((tn, 1), lambda i: (i, 0)),
        compiler_params=pltpu.CompilerParams(
            dimension_semantics=("parallel",),
            vmem_limit_bytes=vmem_bytes,
        ),
        cost_estimate=cost,
    )(x, t)

    # Tiny reduction over exactly n per-row losses (no padded rows to slice off).
    return jnp.sum(per_row[:, 0])


def bpmll_loss_ref(x, t):
    # Pure-JAX reference mirroring the PyTorch forward exactly (brute-force pairwise).
    x = x.astype(jnp.float32)
    t = t.astype(jnp.float32)
    l = x.shape[1]
    dim = jnp.sum(t, axis=1)
    norm = dim * (l - dim)
    t_bar = 1.0 - t
    A = x[:, :, None] - x[:, None, :]
    B = t[:, :, None] * t_bar[:, None, :]
    M = jnp.exp(-A) * B
    loss_i = jnp.sum(M, axis=(2, 1)) / norm
    return jnp.sum(loss_i)


def _make_inputs(key, n, l, p=0.3):
    kx, kt = jax.random.split(key)
    x = jax.random.normal(kx, (n, l), dtype=jnp.float32)
    # Binary targets kept in int8 — the kernel reads them narrow and upcasts.
    t = jax.random.bernoulli(kt, p=p, shape=(n, l)).astype(jnp.int8)
    # Guarantee each row has >=1 positive and >=1 negative label (norm > 0),
    # matching the implicit precondition of the PyTorch module.
    t = t.at[:, 0].set(1)
    t = t.at[:, 1].set(0)
    return x, t


if __name__ == "__main__":
    key = jax.random.PRNGKey(0)
    k1, k2 = jax.random.split(key)

    # Small shape consistent with the module (single full-batch tile, grid == 1).
    x1, t1 = _make_inputs(k1, n=4, l=128)
    loss1 = jax.block_until_ready(bpmll_loss(x1, t1))
    ref1 = jax.block_until_ready(bpmll_loss_ref(x1, t1))
    assert jnp.isfinite(loss1), "kernel produced non-finite loss"
    assert jnp.allclose(loss1, ref1, rtol=1e-5, atol=1e-5), (loss1, ref1)

    # Larger batch: multi-tile grid, ragged (unpadded) last block, int8 targets.
    x2, t2 = _make_inputs(k2, n=300, l=256)
    loss2 = jax.block_until_ready(bpmll_loss(x2, t2))
    ref2 = jax.block_until_ready(bpmll_loss_ref(x2, t2))
    assert jnp.isfinite(loss2), "kernel produced non-finite loss"
    assert jnp.allclose(loss2, ref2, rtol=1e-5, atol=1e-5), (loss2, ref2)

    print("KERNEL_OK")
</pallas_src>

<mosaic_0001>
module attributes {stable_mosaic.version = 11 : i64} {
  func.func @_bpmll_kernel(%arg0: i32, %arg1: memref<4x128xf32, #tpu.memory_space<vmem>>, %arg2: memref<4x128xi8, #tpu.memory_space<vmem>>, %arg3: memref<4x1xf32, #tpu.memory_space<vmem>>) attributes {dimension_semantics = [#tpu.dimension_semantics<parallel>], iteration_bounds = array<i64: 1>, scalar_prefetch = 0 : i64, scratch_operands = 0 : i64, tpu.core_type = #tpu.core_type<tc>, window_params = [{transform_indices = @transform_0, window_bounds = array<i64: 4, 128>}, {transform_indices = @transform_1, window_bounds = array<i64: 4, 128>}, {transform_indices = @transform_2, window_bounds = array<i64: 4, 1>}]} {
    %c0 = arith.constant 0 : index
    %c0_0 = arith.constant 0 : index
    %0 = vector.load %arg1[%c0, %c0_0] : memref<4x128xf32, #tpu.memory_space<vmem>>, vector<4x128xf32>
    %c0_1 = arith.constant 0 : index
    %c0_2 = arith.constant 0 : index
    %1 = vector.load %arg2[%c0_1, %c0_2] : memref<4x128xi8, #tpu.memory_space<vmem>>, vector<4x128xi8>
    %2 = arith.sitofp %1 : vector<4x128xi8> to vector<4x128xf32>
    %cst = arith.constant dense<0.000000e+00> : vector<4xf32>
    %3 = vector.multi_reduction <add>, %2, %cst [1] : vector<4x128xf32> to vector<4xf32>
    %4 = vector.shape_cast %3 : vector<4xf32> to vector<4x1xf32>
    %cst_3 = arith.constant 1.280000e+02 : f32
    %5 = vector.broadcast %cst_3 : f32 to vector<4x1xf32>
    %6 = arith.subf %5, %4 : vector<4x1xf32>
    %7 = arith.mulf %4, %6 : vector<4x1xf32>
    %cst_4 = arith.constant dense<0xFF800000> : vector<4xf32>
    %8 = vector.multi_reduction <maximumf>, %0, %cst_4 [1] : vector<4x128xf32> to vector<4xf32>
    %9 = vector.shape_cast %8 : vector<4xf32> to vector<4x1xf32>
    %10 = vector.broadcast %9 : vector<4x1xf32> to vector<4x128xf32>
    %11 = arith.subf %10, %0 : vector<4x128xf32>
    %12 = math.exp %11 : vector<4x128xf32>
    %13 = arith.mulf %12, %2 : vector<4x128xf32>
    %cst_5 = arith.constant dense<0.000000e+00> : vector<4xf32>
    %14 = vector.multi_reduction <add>, %13, %cst_5 [1] : vector<4x128xf32> to vector<4xf32>
    %15 = vector.shape_cast %14 : vector<4xf32> to vector<4x1xf32>
    %16 = vector.broadcast %9 : vector<4x1xf32> to vector<4x128xf32>
    %17 = arith.subf %0, %16 : vector<4x128xf32>
    %18 = math.exp %17 : vector<4x128xf32>
    %cst_6 = arith.constant 1.000000e+00 : f32
    %19 = vector.broadcast %cst_6 : f32 to vector<4x128xf32>
    %20 = arith.subf %19, %2 : vector<4x128xf32>
    %21 = arith.mulf %18, %20 : vector<4x128xf32>
    %cst_7 = arith.constant dense<0.000000e+00> : vector<4xf32>
    %22 = vector.multi_reduction <add>, %21, %cst_7 [1] : vector<4x128xf32> to vector<4xf32>
    %23 = vector.shape_cast %22 : vector<4xf32> to vector<4x1xf32>
    %24 = arith.mulf %15, %23 : vector<4x1xf32>
    %25 = arith.divf %24, %7 : vector<4x1xf32>
    %c0_8 = arith.constant 0 : index
    %c0_9 = arith.constant 0 : index
    %26 = vector.load %arg3[%c0_8, %c0_9] : memref<4x1xf32, #tpu.memory_space<vmem>>, vector<4x1xf32>
    tpu.vector_store %arg3[%c0_8, %c0_9], %25 {strides = array<i32>} : memref<4x1xf32, #tpu.memory_space<vmem>>, vector<4x1xf32>,
    return
  }
  func.func @transform_0(%arg0: i32) -> (i32, i32) {
    %c0_i32 = arith.constant 0 : i32
    %c0_i32_0 = arith.constant 0 : i32
    return %arg0, %c0_i32 : i32, i32
  }
  func.func @transform_1(%arg0: i32) -> (i32, i32) {
    %c0_i32 = arith.constant 0 : i32
    %c0_i32_0 = arith.constant 0 : i32
    return %arg0, %c0_i32 : i32, i32
  }
  func.func @transform_2(%arg0: i32) -> (i32, i32) {
    %c0_i32 = arith.constant 0 : i32
    %c0_i32_0 = arith.constant 0 : i32
    return %arg0, %c0_i32 : i32, i32
  }
}

</mosaic_0001>

<llo_original>
// kernel: tpu_custom_call.1
$region0: #{tpu_custom_call.1}
  #allocation0 [shape = 'u32[]', space=smem, size = 0x4, offset = 0x4, fixed_abs, tag = 'smem constant byte address 0x4 - core index']
  #allocation1 [shape = 'u32[144,128]{1,0:T(1,128)}', space=vmem, size = 0x12000, scoped, tag = 'internal scratch']
  %s0 = inlined_call_operand.hbm [shape: f32[4,128], index: 0, kind: input, shape index: {}]
  %s1 = inlined_call_operand.vmem [shape: s8[4,128], index: 1, kind: input, shape index: {}]
  %s2 = inlined_call_operand.vmem [shape: f32[4,1], index: 2, kind: output, shape index: {}]
  %s3 = sld [smem:[#allocation0]]
  $region22: #{tpu_custom_call.1} parent=0
    _
  %s5 = ssub.s32 1, %s3
  %s6 = scalar_select 0, %s5, %s3
  $region1: #{tpu_custom_call.1} parent=0
    #allocation2 [shape = 'u8[2048]{0}', space=vmem, size = 0x800, scoped, tag = 'input window, operand 0, single buffered']
    #allocation3 [shape = 's32[1]{0}', space=sflag, size = 0x4, scoped, tag = 'scoped memory for tpu_custom_call.1']
    %7 = vsyncpa [#allocation3], 0
    // Predicated region
    $region2: #{tpu_custom_call.1} parent=1 // pred_check
      _
    $region3: #{tpu_custom_call.1} parent=1 // pred_check_branch
      %9 = sbr.rel (0) target = $region5
    $region4: #{tpu_custom_call.1} parent=1 // pred_region
      %s11 = ssub.s32 64, 64
      %12 = vsyncadd [#allocation3], %s11
      %s14 = sshll.u32 [#allocation2], 4
      %s15 = int_to_ptr.vmem [resolvable:$true] %s14
      %17 = dma.hbm_to_vmem [thread:$0]  %s0, 64, %s15, [#allocation3]
    $region5: #{tpu_custom_call.1} parent=1 // pred_fallthru
      _
    // Predicated region
    $region6: #{tpu_custom_call.1} parent=1 // pred_check
      _
    $region7: #{tpu_custom_call.1} parent=1 // pred_check_branch
      %19 = sbr.rel (0) target = $region9
    $region8: #{tpu_custom_call.1} parent=1 // pred_region
      _
    $region9: #{tpu_custom_call.1} parent=1 // pred_fallthru
      _
    // Predicated region
    $region10: #{tpu_custom_call.1} parent=1 // pred_check
      _
    $region11: #{tpu_custom_call.1} parent=1 // pred_check_branch
      %21 = sbr.rel (0) target = $region13
    $region12: #{tpu_custom_call.1} parent=1 // pred_region
      %22 = dma.done [#allocation3], 64
    $region13: #{tpu_custom_call.1} parent=1 // pred_fallthru
      _
    %v23 = vld [vmem:[#allocation2] sm:$0xf]
    %v24 = vld [vmem:[%s1] sm:$0x1]
    %v25 = vunpack.c.0.s8 %v24
    %v26 = vcvt.s32.f32 %v25
    %vm27 = vcmask 1043456
    %v28 = vsel %vm27, %v26, 0.0
    %29 = vadd.xlane.f32.xlu0 %v28
    %v30 = vpop.xlane.xlu0 %29
    %v31 = vsub.f32 128.0, %v30
    %v32 = vmul.f32 %v30, %v31
    %v33 = vsel %vm27, %v23, -inf
    %34 = vmax.xlane.f32.xlu0 %v33
    %v35 = vpop.xlane.xlu0 %34
    %v36 = vsub.f32 %v35, %v23
    %v37 = vmul.f32 %v36, 1.442695
    %v38 = vpow.pop %v37
    %v39 = vmul.f32 %v38, %v26
    %v40 = vsel %vm27, %v39, 0.0
    %41 = vadd.xlane.f32.xlu0 %v40
    %v42 = vpop.xlane.xlu0 %41
    %v43 = vsub.f32 %v23, %v35
    %v44 = vmul.f32 %v43, 1.442695
    %v45 = vpow.pop %v44
    %v46 = vsub.f32 1.0, %v26
    %v47 = vmul.f32 %v45, %v46
    %v48 = vsel %vm27, %v47, 0.0
    %49 = vadd.xlane.f32.xlu0 %v48
    %v50 = vpop.xlane.xlu0 %49
    %v51 = vmul.f32 %v42, %v50
    %v52 = vrcp.pop %v32
    %v53 = vmul.f32 %v51, %v52
    %vm54 = vcmask 3072
    %55 = vst.msk [vmem:[%s2] sm:$0xf] %vm54, %v53
    // Predicated region
    $region14: #{tpu_custom_call.1} parent=1 // pred_check
      _
    $region15: #{tpu_custom_call.1} parent=1 // pred_check_branch
      %57 = sbr.rel (0) target = $region17
    $region16: #{tpu_custom_call.1} parent=1 // pred_region
      _
    $region17: #{tpu_custom_call.1} parent=1 // pred_fallthru
      _
    // Predicated region
    $region18: #{tpu_custom_call.1} parent=1 // pred_check
      _
    $region19: #{tpu_custom_call.1} parent=1 // pred_check_branch
      %59 = sbr.rel (0) target = $region21
    $region20: #{tpu_custom_call.1} parent=1 // pred_region
      _
    $region21: #{tpu_custom_call.1} parent=1 // pred_fallthru
      _
    %60 = vsyncpa [#allocation3], 1

</llo_original>
